<compile_context>
chip_gen: v7x
topology: tpu7x:2x2x1
jax: 0.10.0
libtpu: 0.0.40
codegen_flags: <defaults>
</compile_context>

<pallas_src>
import functools

import jax
import jax.numpy as jnp
from jax.experimental import pallas as pl
from jax.experimental.pallas import tpu as pltpu

LANE = 128
MAX_TILE_ROWS = 8192                 # 8192*128*4B = 4 MiB per f32 input block
VMEM_LIMIT_BYTES = 36 * 1024 * 1024  # 3 inputs x 2 buffers x 4 MiB = 24 MiB (+headroom)


def _round_up(x, m):
    return ((x + m - 1) // m) * m


def _loss_kernel(tile_rows, last_rows,
                 lam_ref, pred_ref, target_ref, conf_ref, out_ref):
    lam = lam_ref[0]
    # Cast in-kernel so sub-f32 inputs stream over HBM at native width.
    t = target_ref[...].astype(jnp.float32)
    p = pred_ref[...].astype(jnp.float32)
    c = conf_ref[...].astype(jnp.float32) * lam

    valid = t > 0.0
    # Approximate reciprocal runs on the EUP and skips the Newton refinement
    # of a full f32 divide (saves VALU/EUP slots; ~few-ulp precision loss).
    rc = pl.reciprocal(c, approx=True)
    d = (t - p) * rc
    l2 = d * d + 4.0 * jnp.log1p(c)
    l1 = jnp.sqrt(l2)                 # sqrt >= 0 (or NaN) -> no abs needed

    def _reduce_store(v):
        # jnp.where (not mask-multiply) so NaN/Inf from invalid / stale rows
        # never leaks into the partial sums.
        out_ref[0, 0:1, :] = jnp.sum(jnp.where(v, l1, 0.0), axis=0, keepdims=True)
        out_ref[0, 1:2, :] = jnp.sum(jnp.where(v, jnp.abs(l2), 0.0), axis=0,
                                     keepdims=True)
        # Per-lane count <= tile_rows <= 8192 -> exact in f32.
        out_ref[0, 2:3, :] = jnp.sum(v.astype(jnp.float32), axis=0, keepdims=True)

    if last_rows == tile_rows:
        # Grid divides rows evenly: no tail-mask math anywhere (hot path).
        _reduce_store(valid)
    else:
        # Only the final program pays for the row-tail (stale rows) mask.
        last = pl.num_programs(0) - 1

        @pl.when(pl.program_id(0) != last)
        def _():
            _reduce_store(valid)

        @pl.when(pl.program_id(0) == last)
        def _():
            row = jax.lax.broadcasted_iota(jnp.int32, (tile_rows, LANE), 0)
            _reduce_store(jnp.logical_and(valid, row < last_rows))


@jax.jit
def uncertainty_l1l2_loss(pred, target, conf_inv, conf_lambda):
    assert pred.shape == target.shape == conf_inv.shape, "inconsistent dimensions"
    n = pred.size
    rows = n // LANE
    main_n = rows * LANE
    rem = n - main_n

    lam = jnp.asarray(conf_lambda, jnp.float32)
    s1 = jnp.float32(0.0)
    s2 = jnp.float32(0.0)
    cnt = jnp.float32(0.0)

    if rows > 0:
        def as2d(x):
            if rem == 0:
                return x.reshape(rows, LANE)          # free view of contiguous data
            # TODO(synk): offset-0 prefix slice; XLA may still materialize a
            # copy for non-lane-aligned inputs (never worse than the old
            # full-array pad; the <128-elem remainder goes to the epilogue).
            return x.reshape(-1)[:main_n].reshape(rows, LANE)

        p2, t2, c2 = as2d(pred), as2d(target), as2d(conf_inv)

        # Tiling: biggest blocks that fit VMEM; mid-size inputs get >=2 blocks
        # so the "parallel" grid axis can shard across both v7x TensorCores.
        if rows <= 8:
            tile_rows, grid_n = rows, 1               # single full-extent block
        elif rows <= 2 * MAX_TILE_ROWS:
            tile_rows = _round_up(pl.cdiv(rows, 2), 8)
            grid_n = pl.cdiv(rows, tile_rows)
        else:
            tile_rows = MAX_TILE_ROWS
            grid_n = pl.cdiv(rows, tile_rows)
        last_rows = rows - (grid_n - 1) * tile_rows   # static Python int

        kernel = functools.partial(_loss_kernel, tile_rows, last_rows)

        in_spec = pl.BlockSpec((tile_rows, LANE), lambda i, lam_ref: (i, 0))
        out_spec = pl.BlockSpec((1, 3, LANE), lambda i, lam_ref: (i, 0, 0))

        bytes_in = main_n * (pred.dtype.itemsize + target.dtype.itemsize
                             + conf_inv.dtype.itemsize)
        cost = pl.CostEstimate(flops=10 * main_n,
                               transcendentals=3 * main_n,
                               bytes_accessed=bytes_in + grid_n * 3 * LANE * 4)

        parts = pl.pallas_call(
            kernel,
            out_shape=jax.ShapeDtypeStruct((grid_n, 3, LANE), jnp.float32),
            grid_spec=pltpu.PrefetchScalarGridSpec(
                num_scalar_prefetch=1,
                grid=(grid_n,),
                in_specs=[in_spec, in_spec, in_spec],
                out_specs=out_spec,
            ),
            compiler_params=pltpu.CompilerParams(
                dimension_semantics=("parallel",),
                vmem_limit_bytes=VMEM_LIMIT_BYTES),
            cost_estimate=cost,
        )(lam.reshape(1), p2, t2, c2)

        sums = jnp.sum(parts, axis=(0, 2))            # (3,): sum|l1|, sum|l2|, count
        s1, s2, cnt = sums[0], sums[1], sums[2]

    if rem:
        # < 128-element tail handled in pure JAX (negligible HBM traffic;
        # replaces the old whole-array concatenate/pad copies).
        pt = pred.reshape(-1)[main_n:].astype(jnp.float32)
        tt = target.reshape(-1)[main_n:].astype(jnp.float32)
        ct = conf_inv.reshape(-1)[main_n:].astype(jnp.float32) * lam
        v = tt > 0.0
        d = (tt - pt) / ct
        l2t = d * d + 4.0 * jnp.log1p(ct)
        l1t = jnp.sqrt(l2t)
        s1 = s1 + jnp.sum(jnp.where(v, l1t, 0.0))
        s2 = s2 + jnp.sum(jnp.where(v, jnp.abs(l2t), 0.0))
        cnt = cnt + jnp.sum(v.astype(jnp.float32))

    # NOTE: count kept in f32 (exact below 2^24 valid elements; ~1e-7 relative
    # error beyond). cnt == 0 -> NaN/Inf, matching the PyTorch mean-of-empty.
    return s1 / cnt + s2 / cnt


def _reference(pred, target, conf_inv, conf_lambda):
    mask = target > 0
    c = conf_inv * conf_lambda
    l2 = (target - pred) ** 2 / c ** 2 + 4.0 * jnp.log1p(c)
    l1 = jnp.sqrt(l2)
    cnt = jnp.sum(mask)
    l1m = jnp.sum(jnp.where(mask, jnp.abs(l1), 0.0)) / cnt
    l2m = jnp.sum(jnp.where(mask, jnp.abs(l2), 0.0)) / cnt
    return l1m + l2m


if __name__ == "__main__":
    key = jax.random.PRNGKey(0)
    k1, k2, k3 = jax.random.split(key, 3)
    conf_lambda = 0.5

    def check(shape, ka, kb, kc):
        pred = jax.random.normal(ka, shape, jnp.float32)
        target = jax.random.normal(kb, shape, jnp.float32) + 0.5
        conf_inv = jnp.abs(jax.random.normal(kc, shape, jnp.float32)) + 0.1
        out = jax.block_until_ready(
            uncertainty_l1l2_loss(pred, target, conf_inv, conf_lambda))
        ref = _reference(pred, target, conf_inv, conf_lambda)
        # Tolerance covers the approx-reciprocal fast path (typically the
        # observed error is orders of magnitude smaller).
        assert jnp.allclose(out, ref, rtol=2e-3, atol=2e-3), (shape, out, ref)

    # Lane-aligned numel (2048): 16 rows -> 2 blocks of 8 (2-TC split path).
    check((2, 4, 16, 16), k1, k2, k3)
    # Non-lane-aligned numel (960): 7-row main kernel + 64-element epilogue.
    check((1, 4, 16, 15), k2, k3, k1)
    # 20 rows -> tile 16, partial last block: exercises the pl.when tail mask.
    check((2, 5, 16, 16), k3, k1, k2)

    print("KERNEL_OK")
</pallas_src>

<mosaic_0001>
module attributes {stable_mosaic.version = 11 : i64} {
  func.func @_loss_kernel(%arg0: i32, %arg1: memref<1xf32, #tpu.memory_space<smem>>, %arg2: memref<8x128xf32, #tpu.memory_space<vmem>>, %arg3: memref<8x128xf32, #tpu.memory_space<vmem>>, %arg4: memref<8x128xf32, #tpu.memory_space<vmem>>, %arg5: memref<1x3x128xf32, #tpu.memory_space<vmem>>) attributes {dimension_semantics = [#tpu.dimension_semantics<parallel>], iteration_bounds = array<i64: 2>, scalar_prefetch = 1 : i64, scratch_operands = 0 : i64, tpu.core_type = #tpu.core_type<tc>, window_params = [{transform_indices = @transform_0, window_bounds = array<i64: 8, 128>}, {transform_indices = @transform_1, window_bounds = array<i64: 8, 128>}, {transform_indices = @transform_2, window_bounds = array<i64: 8, 128>}, {transform_indices = @transform_3, window_bounds = array<i64: 1, 3, 128>}]} {
    %c0 = arith.constant 0 : index
    %0 = memref.load %arg1[%c0] : memref<1xf32, #tpu.memory_space<smem>>
    %c0_0 = arith.constant 0 : index
    %c0_1 = arith.constant 0 : index
    %1 = vector.load %arg3[%c0_0, %c0_1] : memref<8x128xf32, #tpu.memory_space<vmem>>, vector<8x128xf32>
    %c0_2 = arith.constant 0 : index
    %c0_3 = arith.constant 0 : index
    %2 = vector.load %arg2[%c0_2, %c0_3] : memref<8x128xf32, #tpu.memory_space<vmem>>, vector<8x128xf32>
    %c0_4 = arith.constant 0 : index
    %c0_5 = arith.constant 0 : index
    %3 = vector.load %arg4[%c0_4, %c0_5] : memref<8x128xf32, #tpu.memory_space<vmem>>, vector<8x128xf32>
    %4 = vector.broadcast %0 : f32 to vector<8x128xf32>
    %5 = arith.mulf %3, %4 : vector<8x128xf32>
    %cst = arith.constant 0.000000e+00 : f32
    %6 = vector.broadcast %cst : f32 to vector<8x128xf32>
    %7 = arith.cmpf ogt, %1, %6 : vector<8x128xf32>
    %8 = tpu.reciprocal %5 {approx = true} : vector<8x128xf32> -> vector<8x128xf32>
    %9 = arith.subf %1, %2 : vector<8x128xf32>
    %10 = arith.mulf %9, %8 : vector<8x128xf32>
    %11 = arith.mulf %10, %10 : vector<8x128xf32>
    %12 = math.log1p %5 : vector<8x128xf32>
    %cst_6 = arith.constant 4.000000e+00 : f32
    %13 = vector.broadcast %cst_6 : f32 to vector<8x128xf32>
    %14 = arith.mulf %13, %12 : vector<8x128xf32>
    %15 = arith.addf %11, %14 : vector<8x128xf32>
    %16 = math.sqrt %15 : vector<8x128xf32>
    %cst_7 = arith.constant 0.000000e+00 : f32
    %17 = vector.broadcast %cst_7 : f32 to vector<8x128xf32>
    %18 = arith.select %7, %16, %17 : vector<8x128xi1>, vector<8x128xf32>
    %cst_8 = arith.constant dense<0.000000e+00> : vector<128xf32>
    %19 = vector.multi_reduction <add>, %18, %cst_8 [0] : vector<8x128xf32> to vector<128xf32>
    %20 = vector.shape_cast %19 : vector<128xf32> to vector<1x128xf32>
    %c0_9 = arith.constant 0 : index
    %c0_10 = arith.constant 0 : index
    %c0_11 = arith.constant 0 : index
    %21 = vector.load %arg5[%c0_9, %c0_10, %c0_11] : memref<1x3x128xf32, #tpu.memory_space<vmem>>, vector<1x1x128xf32>
    %22 = vector.shape_cast %21 : vector<1x1x128xf32> to vector<1x128xf32>
    %23 = vector.shape_cast %20 : vector<1x128xf32> to vector<1x1x128xf32>
    tpu.vector_store %arg5[%c0_9, %c0_10, %c0_11], %23 {strides = array<i32>} : memref<1x3x128xf32, #tpu.memory_space<vmem>>, vector<1x1x128xf32>,
    %24 = math.absf %15 : vector<8x128xf32>
    %cst_12 = arith.constant 0.000000e+00 : f32
    %25 = vector.broadcast %cst_12 : f32 to vector<8x128xf32>
    %26 = arith.select %7, %24, %25 : vector<8x128xi1>, vector<8x128xf32>
    %cst_13 = arith.constant dense<0.000000e+00> : vector<128xf32>
    %27 = vector.multi_reduction <add>, %26, %cst_13 [0] : vector<8x128xf32> to vector<128xf32>
    %28 = vector.shape_cast %27 : vector<128xf32> to vector<1x128xf32>
    %c0_14 = arith.constant 0 : index
    %c1 = arith.constant 1 : index
    %c0_15 = arith.constant 0 : index
    %29 = vector.load %arg5[%c0_14, %c1, %c0_15] : memref<1x3x128xf32, #tpu.memory_space<vmem>>, vector<1x1x128xf32>
    %30 = vector.shape_cast %29 : vector<1x1x128xf32> to vector<1x128xf32>
    %31 = vector.shape_cast %28 : vector<1x128xf32> to vector<1x1x128xf32>
    tpu.vector_store %arg5[%c0_14, %c1, %c0_15], %31 {strides = array<i32>} : memref<1x3x128xf32, #tpu.memory_space<vmem>>, vector<1x1x128xf32>,
    %32 = arith.extui %7 : vector<8x128xi1> to vector<8x128xi32>
    %33 = arith.sitofp %32 : vector<8x128xi32> to vector<8x128xf32>
    %cst_16 = arith.constant dense<0.000000e+00> : vector<128xf32>
    %34 = vector.multi_reduction <add>, %33, %cst_16 [0] : vector<8x128xf32> to vector<128xf32>
    %35 = vector.shape_cast %34 : vector<128xf32> to vector<1x128xf32>
    %c0_17 = arith.constant 0 : index
    %c2 = arith.constant 2 : index
    %c0_18 = arith.constant 0 : index
    %36 = vector.load %arg5[%c0_17, %c2, %c0_18] : memref<1x3x128xf32, #tpu.memory_space<vmem>>, vector<1x1x128xf32>
    %37 = vector.shape_cast %36 : vector<1x1x128xf32> to vector<1x128xf32>
    %38 = vector.shape_cast %35 : vector<1x128xf32> to vector<1x1x128xf32>
    tpu.vector_store %arg5[%c0_17, %c2, %c0_18], %38 {strides = array<i32>} : memref<1x3x128xf32, #tpu.memory_space<vmem>>, vector<1x1x128xf32>,
    return
  }
  func.func @transform_0(%arg0: i32, %arg1: memref<1xf32, #tpu.memory_space<smem>>) -> (i32, i32) {
    %c0_i32 = arith.constant 0 : i32
    %c0_i32_0 = arith.constant 0 : i32
    return %arg0, %c0_i32 : i32, i32
  }
  func.func @transform_1(%arg0: i32, %arg1: memref<1xf32, #tpu.memory_space<smem>>) -> (i32, i32) {
    %c0_i32 = arith.constant 0 : i32
    %c0_i32_0 = arith.constant 0 : i32
    return %arg0, %c0_i32 : i32, i32
  }
  func.func @transform_2(%arg0: i32, %arg1: memref<1xf32, #tpu.memory_space<smem>>) -> (i32, i32) {
    %c0_i32 = arith.constant 0 : i32
    %c0_i32_0 = arith.constant 0 : i32
    return %arg0, %c0_i32 : i32, i32
  }
  func.func @transform_3(%arg0: i32, %arg1: memref<1xf32, #tpu.memory_space<smem>>) -> (i32, i32, i32) {
    %c0_i32 = arith.constant 0 : i32
    %c0_i32_0 = arith.constant 0 : i32
    %c0_i32_1 = arith.constant 0 : i32
    return %arg0, %c0_i32, %c0_i32_0 : i32, i32, i32
  }
}

</mosaic_0001>

<llo_original>
// kernel: uncertainty_l1l2_loss.1
$region0: #{uncertainty_l1l2_loss.1}
  #allocation0 [shape = 'u32[]', space=smem, size = 0x4, offset = 0x4, fixed_abs, tag = 'smem constant byte address 0x4 - core index']
  #allocation1 [shape = 'u32[144,128]{1,0:T(1,128)}', space=vmem, size = 0x12000, scoped, tag = 'internal scratch']
  #allocation2 [shape = 's32[1]{0}', space=sflag, size = 0x4, scoped, tag = 'scoped memory for uncertainty_l1l2_loss.1']
  #allocation3 [shape = 'f32[1]{0:T(128)S(6)}', space=smem, size = 0x200, scoped, tag = 'prefetched SMEM operand 0']
  %s0 = inlined_call_operand.<no memory space> [shape: f32[1], index: 0, kind: input, shape index: {}]
  %s1 = inlined_call_operand.vmem [shape: f32[16,128], index: 1, kind: input, shape index: {}]
  %s2 = inlined_call_operand.vmem [shape: f32[16,128], index: 2, kind: input, shape index: {}]
  %s3 = inlined_call_operand.vmem [shape: f32[16,128], index: 3, kind: input, shape index: {}]
  %s4 = inlined_call_operand.vmem [shape: f32[2,3,128], index: 4, kind: output, shape index: {}]
  %s5 = sld [smem:[#allocation0]]
  $region45: #{uncertainty_l1l2_loss.1} parent=0
    _
  %s7 = ssub.s32 1, %s5
  %s8 = scalar_select 0, %s7, %s5
  %9 = sst [smem:[#allocation3]] %s0
  loop: start=0, step=1, limit=4
  $region2: #{uncertainty_l1l2_loss.1} parent=0 // loop_pre_header
    _
  $region3: #{uncertainty_l1l2_loss.1} parent=0 // loop_header
    %s11 = sphi 0, %s15
    %p12 = scmp.ge.s32.totalorder %s11, 4
    %s21 = sphi 0, %s23
    %s24 = sphi 0, %s21
    %s25 = sphi 0, %s24
    %s41 = sphi 0, %s25
    %s47 = sphi 0, %s49
    %s50 = sphi 0, %s47
    %s51 = sphi 0, %s50
    %s67 = sphi 0, %s51
    %s73 = sphi 0, %s75
    %s76 = sphi 0, %s73
    %s77 = sphi 0, %s76
    %s93 = sphi 0, %s77
    %s99 = sphi 0, %s101
    %s102 = sphi 0, %s99
    %s103 = sphi 0, %s102
    %s119 = sphi 0, %s103
  $region4: #{uncertainty_l1l2_loss.1} parent=0 // loop_header_branch
    %14 = sbr.rel (%p12) target = $region8
  $region5: #{uncertainty_l1l2_loss.1} parent=0 // loop_body
    %s16 = ssub.s32 %s11, 1
    %s17 = ssub.s32 %s11, 2
    %s18 = sadd.s32 %s11, 1
    %s19 = ssub.s32 %s11, %s18
    %p20 = scmp.eq.s32.totalorder %s19, 0
    %s22 = sadd.s32 %s21, 1
    %s23 = scalar_select %p20, %s21, %s22
    %p26 = pneg %p20
    %p27 = scmp.eq.s32.totalorder %s11, 1
    %p28 = por %p26, %p27
    %p29 = scmp.ne.s32.totalorder %s21, %s24
    %p30 = scmp.eq.s32.totalorder %s11, 0
    %p31 = por %p29, %p30
    %p32 = scmp.ne.s32.totalorder %s21, %s24
    %p33 = scmp.eq.s32.totalorder %s16, 1
    %p34 = por %p32, %p33
    %p35 = scmp.ne.s32.totalorder %s24, %s25
    %p36 = scmp.eq.s32.totalorder %s16, 0
    %p37 = por %p35, %p36
    %p38 = scmp.ne.s32.totalorder %s24, %s25
    %p39 = scmp.eq.s32.totalorder %s17, 1
    %p40 = por %p38, %p39
    %p42 = scmp.ne.s32.totalorder %s25, %s41
    %p43 = scmp.eq.s32.totalorder %s17, 0
    %p44 = por %p42, %p43
    %s45 = ssub.s32 %s11, %s18
    %p46 = scmp.eq.s32.totalorder %s45, 0
    %s48 = sadd.s32 %s47, 1
    %s49 = scalar_select %p46, %s47, %s48
    %p52 = pneg %p46
    %p53 = scmp.eq.s32.totalorder %s11, 1
    %p54 = por %p52, %p53
    %p55 = scmp.ne.s32.totalorder %s47, %s50
    %p56 = scmp.eq.s32.totalorder %s11, 0
    %p57 = por %p55, %p56
    %p58 = scmp.ne.s32.totalorder %s47, %s50
    %p59 = scmp.eq.s32.totalorder %s16, 1
    %p60 = por %p58, %p59
    %p61 = scmp.ne.s32.totalorder %s50, %s51
    %p62 = scmp.eq.s32.totalorder %s16, 0
    %p63 = por %p61, %p62
    %p64 = scmp.ne.s32.totalorder %s50, %s51
    %p65 = scmp.eq.s32.totalorder %s17, 1
    %p66 = por %p64, %p65
    %p68 = scmp.ne.s32.totalorder %s51, %s67
    %p69 = scmp.eq.s32.totalorder %s17, 0
    %p70 = por %p68, %p69
    %s71 = ssub.s32 %s11, %s18
    %p72 = scmp.eq.s32.totalorder %s71, 0
    %s74 = sadd.s32 %s73, 1
    %s75 = scalar_select %p72, %s73, %s74
    %p78 = pneg %p72
    %p79 = scmp.eq.s32.totalorder %s11, 1
    %p80 = por %p78, %p79
    %p81 = scmp.ne.s32.totalorder %s73, %s76
    %p82 = scmp.eq.s32.totalorder %s11, 0
    %p83 = por %p81, %p82
    %p84 = scmp.ne.s32.totalorder %s73, %s76
    %p85 = scmp.eq.s32.totalorder %s16, 1
    %p86 = por %p84, %p85
    %p87 = scmp.ne.s32.totalorder %s76, %s77
    %p88 = scmp.eq.s32.totalorder %s16, 0
    %p89 = por %p87, %p88
    %p90 = scmp.ne.s32.totalorder %s76, %s77
    %p91 = scmp.eq.s32.totalorder %s17, 1
    %p92 = por %p90, %p91
    %p94 = scmp.ne.s32.totalorder %s77, %s93
    %p95 = scmp.eq.s32.totalorder %s17, 0
    %p96 = por %p94, %p95
    %s97 = ssub.s32 %s11, %s18
    %p98 = scmp.eq.s32.totalorder %s97, 0
    %s100 = sadd.s32 %s99, 1
    %s101 = scalar_select %p98, %s99, %s100
    %p104 = pneg %p98
    %p105 = scmp.eq.s32.totalorder %s11, 1
    %p106 = por %p104, %p105
    %p107 = scmp.ne.s32.totalorder %s99, %s102
    %p108 = scmp.eq.s32.totalorder %s11, 0
    %p109 = por %p107, %p108
    %p110 = scmp.ne.s32.totalorder %s99, %s102
    %p111 = scmp.eq.s32.totalorder %s16, 1
    %p112 = por %p110, %p111
    %p113 = scmp.ne.s32.totalorder %s102, %s103
    %p114 = scmp.eq.s32.totalorder %s16, 0
    %p115 = por %p113, %p114
    %p116 = scmp.ne.s32.totalorder %s102, %s103
    %p117 = scmp.eq.s32.totalorder %s17, 1
    %p118 = por %p116, %p117
    %p120 = scmp.ne.s32.totalorder %s103, %s119
    %p121 = scmp.eq.s32.totalorder %s17, 0
    %p122 = por %p120, %p121
    %p123 = scmp.le.s32.totalorder 1, %s11
    %p124 = scmp.lt.s32.totalorder %s11, 3
    %p125 = pnand %p123, %p124
    %p126 = pneg %p125
    // Predicated region
    $region9: #{uncertainty_l1l2_loss.1} parent=5 // pred_check
      _
    $region10: #{uncertainty_l1l2_loss.1} parent=5 // pred_check_branch
      %128 = sbr.rel (%p125) target = $region12
    $region11: #{uncertainty_l1l2_loss.1} parent=5 // pred_region
      %s129 = ssub.s32 %s11, 1
    $region12: #{uncertainty_l1l2_loss.1} parent=5 // pred_fallthru
      _
    %p130 = scmp.lt.s32.totalorder %s11, 2
    // Predicated region
    $region13: #{uncertainty_l1l2_loss.1} parent=5 // pred_check
      %p131 = pneg %p130
    $region14: #{uncertainty_l1l2_loss.1} parent=5 // pred_check_branch
      %133 = sbr.rel (%p131) target = $region16
    $region15: #{uncertainty_l1l2_loss.1} parent=5 // pred_region
      // Predicated region
      $region17: #{uncertainty_l1l2_loss.1} parent=15 // pred_check
        %p134 = pneg %p31
      $region18: #{uncertainty_l1l2_loss.1} parent=15 // pred_check_branch
        %136 = sbr.rel (%p134) target = $region20
      $region19: #{uncertainty_l1l2_loss.1} parent=15 // pred_region
        %p137 = scmp.lt.s32.totalorder %s11, 1
        %s138 = scalar_select %p137, %s11, 1
        %s139 = smul.addr %s138, 8
        %s140 = scalar_lea.vmem %s1, %s139
      $region20: #{uncertainty_l1l2_loss.1} parent=15 // pred_fallthru
        _
      // Predicated region
      $region21: #{uncertainty_l1l2_loss.1} parent=15 // pred_check
        %p141 = pneg %p57
      $region22: #{uncertainty_l1l2_loss.1} parent=15 // pred_check_branch
        %143 = sbr.rel (%p141) target = $region24
      $region23: #{uncertainty_l1l2_loss.1} parent=15 // pred_region
        %p144 = scmp.lt.s32.totalorder %s11, 1
        %s145 = scalar_select %p144, %s11, 1
        %s146 = smul.addr %s145, 8
        %s147 = scalar_lea.vmem %s2, %s146
      $region24: #{uncertainty_l1l2_loss.1} parent=15 // pred_fallthru
        _
      // Predicated region
      $region25: #{uncertainty_l1l2_loss.1} parent=15 // pred_check
        %p148 = pneg %p83
      $region26: #{uncertainty_l1l2_loss.1} parent=15 // pred_check_branch
        %150 = sbr.rel (%p148) target = $region28
      $region27: #{uncertainty_l1l2_loss.1} parent=15 // pred_region
        %p151 = scmp.lt.s32.totalorder %s11, 1
        %s152 = scalar_select %p151, %s11, 1
        %s153 = smul.addr %s152, 8
        %s154 = scalar_lea.vmem %s3, %s153
      $region28: #{uncertainty_l1l2_loss.1} parent=15 // pred_fallthru
        _
    $region16: #{uncertainty_l1l2_loss.1} parent=5 // pred_fallthru
      _
    %p155 = scmp.le.s32.totalorder 1, %s11
    %p156 = scmp.lt.s32.totalorder %s11, 3
    %p157 = pnand %p155, %p156
    %p158 = pneg %p157
    // Predicated region
    $region29: #{uncertainty_l1l2_loss.1} parent=5 // pred_check
      _
    $region30: #{uncertainty_l1l2_loss.1} parent=5 // pred_check_branch
      %160 = sbr.rel (%p157) target = $region32
    $region31: #{uncertainty_l1l2_loss.1} parent=5 // pred_region
      %s161 = ssub.s32 %s11, 1
      %p162 = scmp.lt.s32.totalorder %s16, 1
      %s163 = scalar_select %p162, %s16, 1
      %s164 = smul.addr %s163, 8
      %s165 = scalar_lea.vmem %s1, %s164
      %p166 = pneg %p37
      %p167 = pneg %p34
      %p168 = scmp.lt.s32.totalorder %s16, 1
      %s169 = scalar_select %p168, %s16, 1
      %s170 = smul.addr %s169, 8
      %s171 = scalar_lea.vmem %s2, %s170
      %p172 = pneg %p63
      %p173 = pneg %p60
      %p174 = scmp.lt.s32.totalorder %s16, 1
      %s175 = scalar_select %p174, %s16, 1
      %s176 = smul.addr %s175, 8
      %s177 = scalar_lea.vmem %s3, %s176
      %p178 = pneg %p89
      %p179 = pneg %p86
      %p180 = pneg %p115
      %p181 = pneg %p112
      %p182 = scmp.lt.s32.totalorder %s16, 1
      %s183 = scalar_select %p182, %s16, 1
      %s184 = smul.addr %s183, 4
      %s185 = scalar_lea.vmem %s4, %s184
      %p186 = scmp.lt.s32.totalorder %s16, 1
      %s187 = scalar_select %p186, %s16, 1
      %s188 = smul.addr %s187, 8
      %s189 = scalar_lea.vmem %s1, %s188
      %p190 = scmp.lt.s32.totalorder %s16, 1
      %s191 = scalar_select %p190, %s16, 1
      %s192 = smul.addr %s191, 8
      %s193 = scalar_lea.vmem %s2, %s192
      %p194 = scmp.lt.s32.totalorder %s16, 1
      %s195 = scalar_select %p194, %s16, 1
      %s196 = smul.addr %s195, 8
      %s197 = scalar_lea.vmem %s3, %s196
      %p198 = scmp.lt.s32.totalorder %s16, 1
      %s199 = scalar_select %p198, %s16, 1
      %s200 = smul.addr %s199, 4
      %s201 = scalar_lea.vmem %s4, %s200
      %s202 = sld [smem:[#allocation3]]
      %v203 = vld [vmem:[%s193] sm:$0xff]
      %v204 = vld [vmem:[%s189] sm:$0xff]
      %v205 = vld [vmem:[%s197] sm:$0xff]
      %v206 = vstv %s202
      %v207 = vmul.f32 %v205, %v206
      %vm208 = vcmp.gt.f32.partialorder %v203, 0.0
      %v209 = vrcp.pop %v207
      %v210 = vsub.f32 %v203, %v204
      %v211 = vmul.f32 %v210, %v209
      %v212 = vmul.f32 %v211, %v211
      %v213 = vadd.f32 %v207, 1.0
      %v214 = vlog2.pop %v213
      %v215 = vmul.f32 %v214, 0.6931472
      %v216 = vmul.f32 -0.5, %v207
      %v217 = vadd.f32 %v216, 1.0
      %v218 = vmul.f32 %v217, %v207
      %v219 = vand.u32 2147483647, %v207
      %vm220 = vcmp.lt.f32.partialorder %v219, 0.0004427343
      %v221 = vsel %vm220, %v218, %v215
      %v222 = vmul.f32 %v221, 4.0
      %v223 = vadd.f32 %v212, %v222
      %v224 = vrsqrt.pop %v223
      %v225 = vmul.f32 %v223, %v224
      %vm226 = vcmp.eq.f32.partialorder %v223, inf
      %v227 = vsel %vm226, %v223, %v225
      %vm228 = vcmp.eq.f32.partialorder %v223, 0.0
      %v229 = vand.u32 %v223, 2147483648
      %v230 = vsel %vm228, %v229, %v227
      %v231 = vsel %vm208, %v230, 0.0
      %v232 = vrot.slane %v231, 4
      %v233 = vadd.f32 %v231, %v232
      %v234 = vrot.slane %v233, 2
      %v235 = vadd.f32 %v233, %v234
      %v236 = vrot.slane %v235, 1
      %v237 = vadd.f32 %v235, %v236
      %238 = vst [vmem:[%s201] sm:$0x1] %v237
      %v239 = vand.u32 2147483647, %v223
      %v240 = vsel %vm208, %v239, 0.0
      %v241 = vrot.slane %v240, 4
      %v242 = vadd.f32 %v240, %v241
      %v243 = vrot.slane %v242, 2
      %v244 = vadd.f32 %v242, %v243
      %v245 = vrot.slane %v244, 1
      %v246 = vadd.f32 %v244, %v245
      %247 = vst [vmem:[%s201 + $0x1] sm:$0x1] %v246
      %v248 = vsel %vm208, 1, 0
      %v249 = vcvt.s32.f32 %v248
      %v250 = vrot.slane %v249, 4
      %v251 = vadd.f32 %v249, %v250
      %v252 = vrot.slane %v251, 2
      %v253 = vadd.f32 %v251, %v252
      %v254 = vrot.slane %v253, 1
      %v255 = vadd.f32 %v253, %v254
      %256 = vst [vmem:[%s201 + $0x2] sm:$0x1] %v255
      %p257 = scmp.lt.s32.totalorder %s16, 1
      %s258 = scalar_select %p257, %s16, 1
      %s259 = smul.addr %s258, 4
      %s260 = scalar_lea.vmem %s4, %s259
      // Predicated region
      $region33: #{uncertainty_l1l2_loss.1} parent=31 // pred_check
        %p261 = pneg %p112
      $region34: #{uncertainty_l1l2_loss.1} parent=31 // pred_check_branch
        %263 = sbr.rel (%p261) target = $region36
      $region35: #{uncertainty_l1l2_loss.1} parent=31 // pred_region
        _
      $region36: #{uncertainty_l1l2_loss.1} parent=31 // pred_fallthru
        _
    $region32: #{uncertainty_l1l2_loss.1} parent=5 // pred_fallthru
      _
    %p264 = scmp.le.s32.totalorder 2, %s11
    // Predicated region
    $region37: #{uncertainty_l1l2_loss.1} parent=5 // pred_check
      %p265 = pneg %p264
    $region38: #{uncertainty_l1l2_loss.1} parent=5 // pred_check_branch
      %267 = sbr.rel (%p265) target = $region40
    $region39: #{uncertainty_l1l2_loss.1} parent=5 // pred_region
      %s268 = ssub.s32 %s11, 2
      // Predicated region
      $region41: #{uncertainty_l1l2_loss.1} parent=39 // pred_check
        %p269 = pneg %p118
      $region42: #{uncertainty_l1l2_loss.1} parent=39 // pred_check_branch
        %271 = sbr.rel (%p269) target = $region44
      $region43: #{uncertainty_l1l2_loss.1} parent=39 // pred_region
        %p272 = scmp.lt.s32.totalorder %s17, 1
        %s273 = scalar_select %p272, %s17, 1
        %s274 = smul.addr %s273, 4
        %s275 = scalar_lea.vmem %s4, %s274
      $region44: #{uncertainty_l1l2_loss.1} parent=39 // pred_fallthru
        _
    $region40: #{uncertainty_l1l2_loss.1} parent=5 // pred_fallthru
      _
  $region6: #{uncertainty_l1l2_loss.1} parent=0 // loop_footer
    %s15 = sadd.s32 1, %s11
  $region7: #{uncertainty_l1l2_loss.1} parent=0 // loop_footer_branch
    %10 = sbr.rel target = $region3
  $region8: #{uncertainty_l1l2_loss.1} parent=0 // loop_exit
    _

</llo_original>
